<compile_context>
chip_gen: v5e
topology: v5e:2x2
jax: 0.10.0
libtpu: 0.0.40
codegen_flags: <defaults>
</compile_context>

<pallas_src>
import functools

import jax
import jax.numpy as jnp
from jax.experimental import pallas as pl
from jax.experimental.pallas import tpu as pltpu

P_DROP = 0.5
KEEP_SCALE = 1.0 / (1.0 - P_DROP)
KEEP_THRESHOLD = int((1.0 - P_DROP) * (1 << 32))   # keep iff hash < threshold

IN_FEATURES = 28 * 28      # 784
IN_PADDED = 896            # 7 * 128 : lane-aligned K for layer 1
HIDDEN = 256
NUM_CLASSES = 10
OUT_PADDED = 128           # lane-dense output / final-layer N

_GOLDEN = 0x9E3779B9
_SALT1 = 0x85EBCA6B        # layer-1 dropout salt
_SALT2 = 0xC2B2AE35        # layer-2 dropout salt


def _keep_mask(rows, cols, n_cols, seed_u32, salt):
    """Counter-based Bernoulli(1 - P_DROP) keep mask (splitmix32-style hash).

    rows/cols are int32 index grids (global batch row, feature col). Pure jnp
    ops -> identical results inside the Pallas kernel and in the pure-JAX
    reference, on TPU hardware and in interpret mode.
    """
    idx = (rows * n_cols + cols).astype(jnp.uint32)
    z = idx * jnp.uint32(_GOLDEN) + seed_u32 + jnp.uint32(salt)
    z = (z ^ (z >> 16)) * jnp.uint32(0x7FEB352D)
    z = (z ^ (z >> 15)) * jnp.uint32(0x846CA68B)
    z = z ^ (z >> 16)
    return z < jnp.uint32(KEEP_THRESHOLD)


def mlp_kernel(seed_ref, x_ref, w1_ref, b1_ref, w2_ref, b2_ref, w3_ref, b3_ref,
               o_ref, *, training):
    tb = x_ref.shape[0]
    row0 = pl.program_id(0) * tb          # global batch offset of this tile

    if training:
        seed_u32 = seed_ref[0].astype(jnp.uint32)

    def dropout(h, salt):
        if not training:
            return h
        rows = jax.lax.broadcasted_iota(jnp.int32, h.shape, 0) + row0
        cols = jax.lax.broadcasted_iota(jnp.int32, h.shape, 1)
        keep = _keep_mask(rows, cols, h.shape[1], seed_u32, salt)
        return h * jnp.where(keep, jnp.float32(KEEP_SCALE), jnp.float32(0.0))

    # bf16 into the MXU, f32 accumulation; elementwise math in f32.
    x = x_ref[...].astype(jnp.bfloat16)

    h1 = jnp.dot(x, w1_ref[...], preferred_element_type=jnp.float32) + b1_ref[...]
    h1 = dropout(jnp.maximum(h1, 0.0), _SALT1).astype(jnp.bfloat16)

    h2 = jnp.dot(h1, w2_ref[...], preferred_element_type=jnp.float32) + b2_ref[...]
    h2 = dropout(jnp.maximum(h2, 0.0), _SALT2).astype(jnp.bfloat16)

    out = jnp.dot(h2, w3_ref[...], preferred_element_type=jnp.float32) + b3_ref[...]
    o_ref[...] = out.astype(o_ref.dtype)


def _round_up(n, m):
    return (n + m - 1) // m * m


def mnist_net_drop_forward(x, params, *, seed=0, training=True, batch_tile=128):
    """x: (B, 784) float32. params: (w1, b1, w2, b2, w3, b3) with w as (in, out)."""
    w1, b1, w2, b2, w3, b3 = params
    B = x.shape[0]

    # Lane-align K (784 -> 896) and N (10 -> 128) with zero padding (wrapper-side).
    x_p = jnp.pad(x, ((0, 0), (0, IN_PADDED - IN_FEATURES)))
    w1_p = jnp.pad(w1, ((0, IN_PADDED - IN_FEATURES), (0, 0)))
    w3_p = jnp.pad(w3, ((0, 0), (0, OUT_PADDED - NUM_CLASSES)))
    b3_p = jnp.pad(b3, ((0, 0), (0, OUT_PADDED - NUM_CLASSES)))

    # bf16 weights: halves resident weight footprint/DMA; MXU accumulates in f32.
    w1b = w1_p.astype(jnp.bfloat16)
    w2b = w2.astype(jnp.bfloat16)
    w3b = w3_p.astype(jnp.bfloat16)

    # Batch tiling: TB = 128 rows (full MXU rows) when the batch allows it,
    # otherwise the sublane-aligned batch itself.
    tb = min(batch_tile, _round_up(B, 8))
    b_pad = _round_up(B, tb)
    if b_pad != B:
        x_p = jnp.pad(x_p, ((0, b_pad - B), (0, 0)))
    grid = (b_pad // tb,)

    seed_arr = jnp.asarray([seed], dtype=jnp.int32)

    flops = 2 * b_pad * (IN_PADDED * HIDDEN + HIDDEN * HIDDEN + HIDDEN * OUT_PADDED)
    bytes_accessed = (x_p.size * 4 + w1b.size * 2 + w2b.size * 2 + w3b.size * 2
                      + b1.size * 4 + b2.size * 4 + b3_p.size * 4
                      + b_pad * OUT_PADDED * 4)

    out = pl.pallas_call(
        functools.partial(mlp_kernel, training=training),
        out_shape=jax.ShapeDtypeStruct((b_pad, OUT_PADDED), jnp.float32),
        grid=grid,
        in_specs=[
            pl.BlockSpec(memory_space=pltpu.MemorySpace.SMEM),       # seed (scalar)
            pl.BlockSpec((tb, IN_PADDED), lambda i: (i, 0)),          # x batch tile
            pl.BlockSpec((IN_PADDED, HIDDEN), lambda i: (0, 0)),      # w1 (resident)
            pl.BlockSpec((1, HIDDEN), lambda i: (0, 0)),              # b1
            pl.BlockSpec((HIDDEN, HIDDEN), lambda i: (0, 0)),         # w2
            pl.BlockSpec((1, HIDDEN), lambda i: (0, 0)),              # b2
            pl.BlockSpec((HIDDEN, OUT_PADDED), lambda i: (0, 0)),     # w3
            pl.BlockSpec((1, OUT_PADDED), lambda i: (0, 0)),          # b3
        ],
        out_specs=pl.BlockSpec((tb, OUT_PADDED), lambda i: (i, 0)),
        compiler_params=pltpu.CompilerParams(
            dimension_semantics=("parallel",)),
        cost_estimate=pl.CostEstimate(flops=flops, transcendentals=0,
                                      bytes_accessed=bytes_accessed),
    )(seed_arr, x_p, w1b, b1, w2b, b2, w3b, b3_p)

    return out[:B, :NUM_CLASSES]


def init_params(key, in_features=IN_FEATURES, hidden_size=HIDDEN,
                num_classes=NUM_CLASSES):
    """Deterministic init mimicking nn.Linear's uniform(-1/sqrt(in), 1/sqrt(in))."""
    ks = jax.random.split(key, 6)

    def lin(kw, kb, fan_in, fan_out):
        bound = 1.0 / jnp.sqrt(jnp.float32(fan_in))
        w = jax.random.uniform(kw, (fan_in, fan_out), jnp.float32, -bound, bound)
        b = jax.random.uniform(kb, (1, fan_out), jnp.float32, -bound, bound)
        return w, b

    w1, b1 = lin(ks[0], ks[1], in_features, hidden_size)
    w2, b2 = lin(ks[2], ks[3], hidden_size, hidden_size)
    w3, b3 = lin(ks[4], ks[5], hidden_size, num_classes)
    return (w1, b1, w2, b2, w3, b3)


def reference_forward(x, params, *, seed=0, training=False):
    """Pure-JAX reference replicating the kernel numerics (bf16-rounded matmul
    operands, f32 accumulation, hash-based dropout)."""
    w1, b1, w2, b2, w3, b3 = params
    x_p = jnp.pad(x, ((0, 0), (0, IN_PADDED - IN_FEATURES)))
    w1_p = jnp.pad(w1, ((0, IN_PADDED - IN_FEATURES), (0, 0)))
    w3_p = jnp.pad(w3, ((0, 0), (0, OUT_PADDED - NUM_CLASSES)))
    b3_p = jnp.pad(b3, ((0, 0), (0, OUT_PADDED - NUM_CLASSES)))

    def bf(a):
        return a.astype(jnp.bfloat16).astype(jnp.float32)

    def drop(h, salt):
        if not training:
            return h
        rows = jnp.arange(h.shape[0], dtype=jnp.int32)[:, None]
        cols = jnp.arange(h.shape[1], dtype=jnp.int32)[None, :]
        keep = _keep_mask(rows, cols, h.shape[1], jnp.uint32(seed), salt)
        return h * jnp.where(keep, jnp.float32(KEEP_SCALE), jnp.float32(0.0))

    h1 = jnp.maximum(bf(x_p) @ bf(w1_p) + b1, 0.0)
    h1 = drop(h1, _SALT1)
    h2 = jnp.maximum(bf(h1) @ bf(w2) + b2, 0.0)
    h2 = drop(h2, _SALT2)
    out = bf(h2) @ bf(w3_p) + b3_p
    return out[:, :NUM_CLASSES]


if __name__ == "__main__":
    key = jax.random.PRNGKey(0)
    kp, kx = jax.random.split(key)

    B = 8
    params = init_params(kp)
    x = jax.random.normal(kx, (B, IN_FEATURES), dtype=jnp.float32)

    # Eval mode (dropout = identity): check against the pure-JAX reference.
    out_eval = jax.block_until_ready(
        mnist_net_drop_forward(x, params, training=False))
    ref_eval = reference_forward(x, params, training=False)
    assert out_eval.shape == (B, NUM_CLASSES)
    assert jnp.allclose(out_eval, ref_eval, atol=2e-3, rtol=2e-3), \
        float(jnp.max(jnp.abs(out_eval - ref_eval)))

    # Training mode: in-kernel counter-based dropout, checked against a pure-JAX
    # reference that replicates the identical mask.
    out_train = jax.block_until_ready(
        mnist_net_drop_forward(x, params, seed=1234, training=True))
    ref_train = reference_forward(x, params, seed=1234, training=True)
    assert out_train.shape == (B, NUM_CLASSES)
    assert jnp.all(jnp.isfinite(out_train))
    assert jnp.allclose(out_train, ref_train, atol=2e-3, rtol=2e-3), \
        float(jnp.max(jnp.abs(out_train - ref_train)))

    print("KERNEL_OK")
</pallas_src>

<mosaic_0001>
module attributes {stable_mosaic.version = 11 : i64} {
  func.func @mlp_kernel(%arg0: i32, %arg1: memref<1xi32, #tpu.memory_space<smem>>, %arg2: memref<8x896xf32, #tpu.memory_space<vmem>>, %arg3: memref<896x256xbf16, #tpu.memory_space<vmem>>, %arg4: memref<1x256xf32, #tpu.memory_space<vmem>>, %arg5: memref<256x256xbf16, #tpu.memory_space<vmem>>, %arg6: memref<1x256xf32, #tpu.memory_space<vmem>>, %arg7: memref<256x128xbf16, #tpu.memory_space<vmem>>, %arg8: memref<1x128xf32, #tpu.memory_space<vmem>>, %arg9: memref<8x128xf32, #tpu.memory_space<vmem>>) attributes {dimension_semantics = [#tpu.dimension_semantics<parallel>], iteration_bounds = array<i64: 1>, scalar_prefetch = 0 : i64, scratch_operands = 0 : i64, tpu.core_type = #tpu.core_type<tc>, window_params = [{transform_indices = @transform_0, window_bounds = array<i64: 1>}, {transform_indices = @transform_1, window_bounds = array<i64: 8, 896>}, {pipeline_mode = #tpu.pipeline_mode<synchronous>, transform_indices = @transform_2, window_bounds = array<i64: 896, 256>}, {pipeline_mode = #tpu.pipeline_mode<synchronous>, transform_indices = @transform_3, window_bounds = array<i64: 1, 256>}, {pipeline_mode = #tpu.pipeline_mode<synchronous>, transform_indices = @transform_4, window_bounds = array<i64: 256, 256>}, {pipeline_mode = #tpu.pipeline_mode<synchronous>, transform_indices = @transform_5, window_bounds = array<i64: 1, 256>}, {pipeline_mode = #tpu.pipeline_mode<synchronous>, transform_indices = @transform_6, window_bounds = array<i64: 256, 128>}, {pipeline_mode = #tpu.pipeline_mode<synchronous>, transform_indices = @transform_7, window_bounds = array<i64: 1, 128>}, {transform_indices = @transform_8, window_bounds = array<i64: 8, 128>}]} {
    %c0 = arith.constant 0 : index
    %c0_0 = arith.constant 0 : index
    %0 = vector.load %arg2[%c0, %c0_0] : memref<8x896xf32, #tpu.memory_space<vmem>>, vector<8x896xf32>
    %1 = arith.truncf %0 : vector<8x896xf32> to vector<8x896xbf16>
    %c0_1 = arith.constant 0 : index
    %c0_2 = arith.constant 0 : index
    %2 = vector.load %arg3[%c0_1, %c0_2] : memref<896x256xbf16, #tpu.memory_space<vmem>>, vector<896x256xbf16>
    %cst = arith.constant dense<0.000000e+00> : vector<8x256xf32>
    %3 = tpu.matmul %1, %2, %cst {dimension_numbers = #tpu.dot_dimension_numbers<[1], [0], [0], [1], [0, 0, 1, 1], [], []>} : vector<8x896xbf16>, vector<896x256xbf16>, vector<8x256xf32> -> vector<8x256xf32>
    %c0_3 = arith.constant 0 : index
    %c0_4 = arith.constant 0 : index
    %4 = vector.load %arg4[%c0_3, %c0_4] : memref<1x256xf32, #tpu.memory_space<vmem>>, vector<1x256xf32>
    %5 = vector.broadcast %4 : vector<1x256xf32> to vector<8x256xf32>
    %6 = arith.addf %3, %5 : vector<8x256xf32>
    %cst_5 = arith.constant 0.000000e+00 : f32
    %7 = vector.broadcast %cst_5 : f32 to vector<8x256xf32>
    %8 = arith.maximumf %6, %7 : vector<8x256xf32>
    %9 = arith.truncf %8 : vector<8x256xf32> to vector<8x256xbf16>
    %c0_6 = arith.constant 0 : index
    %c0_7 = arith.constant 0 : index
    %10 = vector.load %arg5[%c0_6, %c0_7] : memref<256x256xbf16, #tpu.memory_space<vmem>>, vector<256x256xbf16>
    %cst_8 = arith.constant dense<0.000000e+00> : vector<8x256xf32>
    %11 = tpu.matmul %9, %10, %cst_8 {dimension_numbers = #tpu.dot_dimension_numbers<[1], [0], [0], [1], [0, 0, 1, 1], [], []>} : vector<8x256xbf16>, vector<256x256xbf16>, vector<8x256xf32> -> vector<8x256xf32>
    %c0_9 = arith.constant 0 : index
    %c0_10 = arith.constant 0 : index
    %12 = vector.load %arg6[%c0_9, %c0_10] : memref<1x256xf32, #tpu.memory_space<vmem>>, vector<1x256xf32>
    %13 = vector.broadcast %12 : vector<1x256xf32> to vector<8x256xf32>
    %14 = arith.addf %11, %13 : vector<8x256xf32>
    %cst_11 = arith.constant 0.000000e+00 : f32
    %15 = vector.broadcast %cst_11 : f32 to vector<8x256xf32>
    %16 = arith.maximumf %14, %15 : vector<8x256xf32>
    %17 = arith.truncf %16 : vector<8x256xf32> to vector<8x256xbf16>
    %c0_12 = arith.constant 0 : index
    %c0_13 = arith.constant 0 : index
    %18 = vector.load %arg7[%c0_12, %c0_13] : memref<256x128xbf16, #tpu.memory_space<vmem>>, vector<256x128xbf16>
    %cst_14 = arith.constant dense<0.000000e+00> : vector<8x128xf32>
    %19 = tpu.matmul %17, %18, %cst_14 {dimension_numbers = #tpu.dot_dimension_numbers<[1], [0], [0], [1], [0, 0, 1, 1], [], []>} : vector<8x256xbf16>, vector<256x128xbf16>, vector<8x128xf32> -> vector<8x128xf32>
    %c0_15 = arith.constant 0 : index
    %c0_16 = arith.constant 0 : index
    %20 = vector.load %arg8[%c0_15, %c0_16] : memref<1x128xf32, #tpu.memory_space<vmem>>, vector<1x128xf32>
    %21 = vector.broadcast %20 : vector<1x128xf32> to vector<8x128xf32>
    %22 = arith.addf %19, %21 : vector<8x128xf32>
    %c0_17 = arith.constant 0 : index
    %c0_18 = arith.constant 0 : index
    %23 = vector.load %arg9[%c0_17, %c0_18] : memref<8x128xf32, #tpu.memory_space<vmem>>, vector<8x128xf32>
    tpu.vector_store %arg9[%c0_17, %c0_18], %22 {strides = array<i32>} : memref<8x128xf32, #tpu.memory_space<vmem>>, vector<8x128xf32>,
    return
  }
  func.func @transform_0(%arg0: i32) -> i32 {
    %c0_i32 = arith.constant 0 : i32
    %c0_i32_0 = arith.constant 0 : i32
    return %c0_i32 : i32
  }
  func.func @transform_1(%arg0: i32) -> (i32, i32) {
    %c0_i32 = arith.constant 0 : i32
    %c0_i32_0 = arith.constant 0 : i32
    return %arg0, %c0_i32 : i32, i32
  }
  func.func @transform_2(%arg0: i32) -> (i32, i32) {
    %c0_i32 = arith.constant 0 : i32
    %c0_i32_0 = arith.constant 0 : i32
    %c0_i32_1 = arith.constant 0 : i32
    return %c0_i32, %c0_i32_0 : i32, i32
  }
  func.func @transform_3(%arg0: i32) -> (i32, i32) {
    %c0_i32 = arith.constant 0 : i32
    %c0_i32_0 = arith.constant 0 : i32
    %c0_i32_1 = arith.constant 0 : i32
    return %c0_i32, %c0_i32_0 : i32, i32
  }
  func.func @transform_4(%arg0: i32) -> (i32, i32) {
    %c0_i32 = arith.constant 0 : i32
    %c0_i32_0 = arith.constant 0 : i32
    %c0_i32_1 = arith.constant 0 : i32
    return %c0_i32, %c0_i32_0 : i32, i32
  }
  func.func @transform_5(%arg0: i32) -> (i32, i32) {
    %c0_i32 = arith.constant 0 : i32
    %c0_i32_0 = arith.constant 0 : i32
    %c0_i32_1 = arith.constant 0 : i32
    return %c0_i32, %c0_i32_0 : i32, i32
  }
  func.func @transform_6(%arg0: i32) -> (i32, i32) {
    %c0_i32 = arith.constant 0 : i32
    %c0_i32_0 = arith.constant 0 : i32
    %c0_i32_1 = arith.constant 0 : i32
    return %c0_i32, %c0_i32_0 : i32, i32
  }
  func.func @transform_7(%arg0: i32) -> (i32, i32) {
    %c0_i32 = arith.constant 0 : i32
    %c0_i32_0 = arith.constant 0 : i32
    %c0_i32_1 = arith.constant 0 : i32
    return %c0_i32, %c0_i32_0 : i32, i32
  }
  func.func @transform_8(%arg0: i32) -> (i32, i32) {
    %c0_i32 = arith.constant 0 : i32
    %c0_i32_0 = arith.constant 0 : i32
    return %arg0, %c0_i32 : i32, i32
  }
}

</mosaic_0001>

<llo_original>
// kernel: tpu_custom_call.1
$region0: #{tpu_custom_call.1}
  #allocation0 [shape = 'u32[]', space=smem, size = 0x4, offset = 0x4, fixed_abs, tag = 'smem constant byte address 0x4 - core index']
  #allocation1 [shape = 'u32[72,128]{1,0:T(1,128)}', space=vmem, size = 0x9000, scoped, tag = 'internal scratch']
  #allocation2 [shape = 's32[1]{0:T(128)S(6)}', space=smem, size = 0x200, scoped, tag = 'scoped memory for tpu_custom_call.1']
  %s0 = inlined_call_operand.<no memory space> [shape: s32[1], index: 0, kind: input, shape index: {}]
  %s1 = inlined_call_operand.hbm [shape: f32[8,896], index: 1, kind: input, shape index: {}]
  %s2 = inlined_call_operand.hbm [shape: bf16[896,256], index: 2, kind: input, shape index: {}]
  %s3 = inlined_call_operand.vmem [shape: f32[1,256], index: 3, kind: input, shape index: {}]
  %s4 = inlined_call_operand.hbm [shape: bf16[256,256], index: 4, kind: input, shape index: {}]
  %s5 = inlined_call_operand.vmem [shape: f32[1,256], index: 5, kind: input, shape index: {}]
  %s6 = inlined_call_operand.hbm [shape: bf16[256,128], index: 6, kind: input, shape index: {}]
  %s7 = inlined_call_operand.vmem [shape: f32[1,128], index: 7, kind: input, shape index: {}]
  %s8 = inlined_call_operand.hbm [shape: f32[8,128], index: 8, kind: output, shape index: {}]
  %s9 = sld [smem:[#allocation0]]
  $region58: #{tpu_custom_call.1} parent=0
    _
  %s11 = ssub.s32 1, %s9
  %s12 = scalar_select 0, %s11, %s9
  %13 = sst [smem:[#allocation2]] %s0
  $region1: #{tpu_custom_call.1} parent=0
    #allocation3 [shape = 'u8[28672]{0}', space=vmem, size = 0x7000, scoped, tag = 'input window, operand 1, single buffered']
    #allocation4 [shape = 's32[1]{0}', space=sflag, size = 0x4, scoped, tag = 'scoped memory for tpu_custom_call.1']
    #allocation5 [shape = 's32[1]{0}', space=sflag, size = 0x4, scoped, tag = 'scoped memory for tpu_custom_call.1']
    #allocation6 [shape = 'u8[458752]{0}', space=vmem, size = 0x70000, scoped, tag = 'input window, operand 2, single buffered']
    #allocation7 [shape = 's32[1]{0}', space=sflag, size = 0x4, scoped, tag = 'scoped memory for tpu_custom_call.1']
    #allocation8 [shape = 'u8[131072]{0}', space=vmem, size = 0x20000, scoped, tag = 'input window, operand 4, single buffered']
    #allocation9 [shape = 'u8[65536]{0}', space=vmem, size = 0x10000, scoped, tag = 'input window, operand 6, single buffered']
    #allocation10 [shape = 's32[1]{0}', space=sflag, size = 0x4, scoped, tag = 'scoped memory for tpu_custom_call.1']
    #allocation11 [shape = 'u8[4096]{0}', space=vmem, size = 0x1000, scoped, tag = 'output window, operand 0, single buffered']
    %14 = vsyncpa [#allocation4], 0
    %15 = vsyncpa [#allocation7], 0
    %16 = vsyncpa [#allocation10], 0
    %17 = vsyncpa [#allocation5], 0
    // Predicated region
    $region2: #{tpu_custom_call.1} parent=1 // pred_check
      _
    $region3: #{tpu_custom_call.1} parent=1 // pred_check_branch
      %19 = sbr.rel (0) target = $region5
    $region4: #{tpu_custom_call.1} parent=1 // pred_region
      _
    $region5: #{tpu_custom_call.1} parent=1 // pred_fallthru
      _
    // Predicated region
    $region6: #{tpu_custom_call.1} parent=1 // pred_check
      _
    $region7: #{tpu_custom_call.1} parent=1 // pred_check_branch
      %21 = sbr.rel (0) target = $region9
    $region8: #{tpu_custom_call.1} parent=1 // pred_region
      %23 = vsyncadd [#allocation4], 0
      %s25 = sshll.u32 %s1, 4
      %s26 = int_to_ptr.hbm [resolvable:$true] %s25
      %s27 = sshll.u32 [#allocation3], 4
      %s28 = int_to_ptr.vmem [resolvable:$true] %s27
      %30 = dma.hbm_to_vmem [thread:$0]  %s26, 896, %s28, [#allocation4]
    $region9: #{tpu_custom_call.1} parent=1 // pred_fallthru
      _
    // Predicated region
    $region10: #{tpu_custom_call.1} parent=1 // pred_check
      _
    $region11: #{tpu_custom_call.1} parent=1 // pred_check_branch
      %32 = sbr.rel (0) target = $region13
    $region12: #{tpu_custom_call.1} parent=1 // pred_region
      %34 = vsyncadd [#allocation7], 0
      %s35 = sshll.u32 %s2, 4
      %s36 = int_to_ptr.hbm [resolvable:$true] %s35
      %s37 = sshll.u32 [#allocation6], 4
      %s38 = int_to_ptr.vmem [resolvable:$true] %s37
      %43 = dma.hbm_to_vmem [thread:$0]  %s36, 14336, %s38, [#allocation7], 128, 128, 8
    $region13: #{tpu_custom_call.1} parent=1 // pred_fallthru
      _
    // Predicated region
    $region14: #{tpu_custom_call.1} parent=1 // pred_check
      _
    $region15: #{tpu_custom_call.1} parent=1 // pred_check_branch
      %45 = sbr.rel (0) target = $region17
    $region16: #{tpu_custom_call.1} parent=1 // pred_region
      _
    $region17: #{tpu_custom_call.1} parent=1 // pred_fallthru
      _
    // Predicated region
    $region18: #{tpu_custom_call.1} parent=1 // pred_check
      _
    $region19: #{tpu_custom_call.1} parent=1 // pred_check_branch
      %47 = sbr.rel (0) target = $region21
    $region20: #{tpu_custom_call.1} parent=1 // pred_region
      %49 = vsyncadd [#allocation7], 0
      %s50 = sshll.u32 %s4, 4
      %s51 = int_to_ptr.hbm [resolvable:$true] %s50
      %s52 = sshll.u32 [#allocation8], 4
      %s53 = int_to_ptr.vmem [resolvable:$true] %s52
      %58 = dma.hbm_to_vmem [thread:$0]  %s51, 4096, %s53, [#allocation7], 128, 128, 8
    $region21: #{tpu_custom_call.1} parent=1 // pred_fallthru
      _
    // Predicated region
    $region22: #{tpu_custom_call.1} parent=1 // pred_check
      _
    $region23: #{tpu_custom_call.1} parent=1 // pred_check_branch
      %60 = sbr.rel (0) target = $region25
    $region24: #{tpu_custom_call.1} parent=1 // pred_region
      _
    $region25: #{tpu_custom_call.1} parent=1 // pred_fallthru
      _
    // Predicated region
    $region26: #{tpu_custom_call.1} parent=1 // pred_check
      _
    $region27: #{tpu_custom_call.1} parent=1 // pred_check_branch
      %62 = sbr.rel (0) target = $region29
    $region28: #{tpu_custom_call.1} parent=1 // pred_region
      %64 = vsyncadd [#allocation10], 0
      %s65 = sshll.u32 %s6, 4
      %s66 = int_to_ptr.hbm [resolvable:$true] %s65
      %s67 = sshll.u32 [#allocation9], 4
      %s68 = int_to_ptr.vmem [resolvable:$true] %s67
      %73 = dma.hbm_to_vmem [thread:$0]  %s66, 2048, %s68, [#allocation10], 64, 64, 4
    $region29: #{tpu_custom_call.1} parent=1 // pred_fallthru
      _
    // Predicated region
    $region30: #{tpu_custom_call.1} parent=1 // pred_check
      _
    $region31: #{tpu_custom_call.1} parent=1 // pred_check_branch
      %75 = sbr.rel (0) target = $region33
    $region32: #{tpu_custom_call.1} parent=1 // pred_region
      _
    $region33: #{tpu_custom_call.1} parent=1 // pred_fallthru
      _
    // Predicated region
    $region34: #{tpu_custom_call.1} parent=1 // pred_check
      _
    $region35: #{tpu_custom_call.1} parent=1 // pred_check_branch
      %77 = sbr.rel (0) target = $region37
    $region36: #{tpu_custom_call.1} parent=1 // pred_region
      %79 = dma.done [#allocation4], 896
    $region37: #{tpu_custom_call.1} parent=1 // pred_fallthru
      _
    // Predicated region
    $region38: #{tpu_custom_call.1} parent=1 // pred_check
      _
    $region39: #{tpu_custom_call.1} parent=1 // pred_check_branch
      %81 = sbr.rel (0) target = $region41
    $region40: #{tpu_custom_call.1} parent=1 // pred_region
      %83 = dma.done [#allocation7], 14336
    $region41: #{tpu_custom_call.1} parent=1 // pred_fallthru
      _
    // Predicated region
    $region42: #{tpu_custom_call.1} parent=1 // pred_check
      _
    $region43: #{tpu_custom_call.1} parent=1 // pred_check_branch
      %85 = sbr.rel (0) target = $region45
    $region44: #{tpu_custom_call.1} parent=1 // pred_region
      %87 = dma.done [#allocation7], 4096
    $region45: #{tpu_custom_call.1} parent=1 // pred_fallthru
      _
    // Predicated region
    $region46: #{tpu_custom_call.1} parent=1 // pred_check
      _
    $region47: #{tpu_custom_call.1} parent=1 // pred_check_branch
      %89 = sbr.rel (0) target = $region49
    $region48: #{tpu_custom_call.1} parent=1 // pred_region
      %91 = dma.done [#allocation10], 2048
    $region49: #{tpu_custom_call.1} parent=1 // pred_fallthru
      _
    %v92 = vld [vmem:[#allocation3] sm:$0xff]
    %v93 = vld [vmem:[#allocation3 + $0x8] sm:$0xff]
    %v94 = vld [vmem:[#allocation3 + $0x10] sm:$0xff]
    %v95 = vld [vmem:[#allocation3 + $0x18] sm:$0xff]
    %v96 = vld [vmem:[#allocation3 + $0x20] sm:$0xff]
    %v97 = vld [vmem:[#allocation3 + $0x28] sm:$0xff]
    %v98 = vld [vmem:[#allocation3 + $0x30] sm:$0xff]
    %v99 = vpack.c.bf16 %v92, %v92
    %v100 = vpack.c.bf16 %v93, %v93
    %v101 = vpack.c.bf16 %v94, %v94
    %v102 = vpack.c.bf16 %v95, %v95
    %v103 = vpack.c.bf16 %v96, %v96
    %v104 = vpack.c.bf16 %v97, %v97
    %v105 = vpack.c.bf16 %v98, %v98
    %v106 = vld [vmem:[#allocation6] sm:$0xff]
    %v107 = vld [vmem:[#allocation6 + $0x8] sm:$0xff]
    %v108 = vld [vmem:[#allocation6 + $0x10] sm:$0xff]
    %v109 = vld [vmem:[#allocation6 + $0x18] sm:$0xff]
    %v110 = vld [vmem:[#allocation6 + $0x20] sm:$0xff]
    %v111 = vld [vmem:[#allocation6 + $0x28] sm:$0xff]
    %v112 = vld [vmem:[#allocation6 + $0x30] sm:$0xff]
    %v113 = vld [vmem:[#allocation6 + $0x38] sm:$0xff]
    %v114 = vld [vmem:[#allocation6 + $0x40] sm:$0xff]
    %v115 = vld [vmem:[#allocation6 + $0x48] sm:$0xff]
    %v116 = vld [vmem:[#allocation6 + $0x50] sm:$0xff]
    %v117 = vld [vmem:[#allocation6 + $0x58] sm:$0xff]
    %v118 = vld [vmem:[#allocation6 + $0x60] sm:$0xff]
    %v119 = vld [vmem:[#allocation6 + $0x68] sm:$0xff]
    %v120 = vld [vmem:[#allocation6 + $0x70] sm:$0xff]
    %v121 = vld [vmem:[#allocation6 + $0x78] sm:$0xff]
    %v122 = vld [vmem:[#allocation6 + $0x80] sm:$0xff]
    %v123 = vld [vmem:[#allocation6 + $0x88] sm:$0xff]
    %v124 = vld [vmem:[#allocation6 + $0x90] sm:$0xff]
    %v125 = vld [vmem:[#allocation6 + $0x98] sm:$0xff]
    %v126 = vld [vmem:[#allocation6 + $0xa0] sm:$0xff]
    %v127 = vld [vmem:[#allocation6 + $0xa8] sm:$0xff]
    %v128 = vld [vmem:[#allocation6 + $0xb0] sm:$0xff]
    %v129 = vld [vmem:[#allocation6 + $0xb8] sm:$0xff]
    %v130 = vld [vmem:[#allocation6 + $0xc0] sm:$0xff]
    %v131 = vld [vmem:[#allocation6 + $0xc8] sm:$0xff]
    %v132 = vld [vmem:[#allocation6 + $0xd0] sm:$0xff]
    %v133 = vld [vmem:[#allocation6 + $0xd8] sm:$0xff]
    %v134 = vld [vmem:[#allocation6 + $0xe0] sm:$0xff]
    %v135 = vld [vmem:[#allocation6 + $0xe8] sm:$0xff]
    %v136 = vld [vmem:[#allocation6 + $0xf0] sm:$0xff]
    %v137 = vld [vmem:[#allocation6 + $0xf8] sm:$0xff]
    %v138 = vld [vmem:[#allocation6 + $0x100] sm:$0xff]
    %v139 = vld [vmem:[#allocation6 + $0x108] sm:$0xff]
    %v140 = vld [vmem:[#allocation6 + $0x110] sm:$0xff]
    %v141 = vld [vmem:[#allocation6 + $0x118] sm:$0xff]
    %v142 = vld [vmem:[#allocation6 + $0x120] sm:$0xff]
    %v143 = vld [vmem:[#allocation6 + $0x128] sm:$0xff]
    %v144 = vld [vmem:[#allocation6 + $0x130] sm:$0xff]
    %v145 = vld [vmem:[#allocation6 + $0x138] sm:$0xff]
    %v146 = vld [vmem:[#allocation6 + $0x140] sm:$0xff]
    %v147 = vld [vmem:[#allocation6 + $0x148] sm:$0xff]
    %v148 = vld [vmem:[#allocation6 + $0x150] sm:$0xff]
    %v149 = vld [vmem:[#allocation6 + $0x158] sm:$0xff]
    %v150 = vld [vmem:[#allocation6 + $0x160] sm:$0xff]
    %v151 = vld [vmem:[#allocation6 + $0x168] sm:$0xff]
    %v152 = vld [vmem:[#allocation6 + $0x170] sm:$0xff]
    %v153 = vld [vmem:[#allocation6 + $0x178] sm:$0xff]
    %v154 = vld [vmem:[#allocation6 + $0x180] sm:$0xff]
    %v155 = vld [vmem:[#allocation6 + $0x188] sm:$0xff]
    %v156 = vld [vmem:[#allocation6 + $0x190] sm:$0xff]
    %v157 = vld [vmem:[#allocation6 + $0x198] sm:$0xff]
    %v158 = vld [vmem:[#allocation6 + $0x1a0] sm:$0xff]
    %v159 = vld [vmem:[#allocation6 + $0x1a8] sm:$0xff]
    %v160 = vld [vmem:[#allocation6 + $0x1b0] sm:$0xff]
    %v161 = vld [vmem:[#allocation6 + $0x1b8] sm:$0xff]
    %v162 = vld [vmem:[#allocation6 + $0x1c0] sm:$0xff]
    %v163 = vld [vmem:[#allocation6 + $0x1c8] sm:$0xff]
    %v164 = vld [vmem:[#allocation6 + $0x1d0] sm:$0xff]
    %v165 = vld [vmem:[#allocation6 + $0x1d8] sm:$0xff]
    %v166 = vld [vmem:[#allocation6 + $0x1e0] sm:$0xff]
    %v167 = vld [vmem:[#allocation6 + $0x1e8] sm:$0xff]
    %v168 = vld [vmem:[#allocation6 + $0x1f0] sm:$0xff]
    %v169 = vld [vmem:[#allocation6 + $0x1f8] sm:$0xff]
    %v170 = vld [vmem:[#allocation6 + $0x200] sm:$0xff]
    %v171 = vld [vmem:[#allocation6 + $0x208] sm:$0xff]
    %v172 = vld [vmem:[#allocation6 + $0x210] sm:$0xff]
    %v173 = vld [vmem:[#allocation6 + $0x218] sm:$0xff]
    %v174 = vld [vmem:[#allocation6 + $0x220] sm:$0xff]
    %v175 = vld [vmem:[#allocation6 + $0x228] sm:$0xff]
    %v176 = vld [vmem:[#allocation6 + $0x230] sm:$0xff]
    %v177 = vld [vmem:[#allocation6 + $0x238] sm:$0xff]
    %v178 = vld [vmem:[#allocation6 + $0x240] sm:$0xff]
    %v179 = vld [vmem:[#allocation6 + $0x248] sm:$0xff]
    %v180 = vld [vmem:[#allocation6 + $0x250] sm:$0xff]
    %v181 = vld [vmem:[#allocation6 + $0x258] sm:$0xff]
    %v182 = vld [vmem:[#allocation6 + $0x260] sm:$0xff]
    %v183 = vld [vmem:[#allocation6 + $0x268] sm:$0xff]
    %v184 = vld [vmem:[#allocation6 + $0x270] sm:$0xff]
    %v185 = vld [vmem:[#allocation6 + $0x278] sm:$0xff]
    %v186 = vld [vmem:[#allocation6 + $0x280] sm:$0xff]
    %v187 = vld [vmem:[#allocation6 + $0x288] sm:$0xff]
    %v188 = vld [vmem:[#allocation6 + $0x290] sm:$0xff]
    %v189 = vld [vmem:[#allocation6 + $0x298] sm:$0xff]
    %v190 = vld [vmem:[#allocation6 + $0x2a0] sm:$0xff]
    %v191 = vld [vmem:[#allocation6 + $0x2a8] sm:$0xff]
    %v192 = vld [vmem:[#allocation6 + $0x2b0] sm:$0xff]
    %v193 = vld [vmem:[#allocation6 + $0x2b8] sm:$0xff]
    %v194 = vld [vmem:[#allocation6 + $0x2c0] sm:$0xff]
    %v195 = vld [vmem:[#allocation6 + $0x2c8] sm:$0xff]
    %v196 = vld [vmem:[#allocation6 + $0x2d0] sm:$0xff]
    %v197 = vld [vmem:[#allocation6 + $0x2d8] sm:$0xff]
    %v198 = vld [vmem:[#allocation6 + $0x2e0] sm:$0xff]
    %v199 = vld [vmem:[#allocation6 + $0x2e8] sm:$0xff]
    %v200 = vld [vmem:[#allocation6 + $0x2f0] sm:$0xff]
    %v201 = vld [vmem:[#allocation6 + $0x2f8] sm:$0xff]
    %v202 = vld [vmem:[#allocation6 + $0x300] sm:$0xff]
    %v203 = vld [vmem:[#allocation6 + $0x308] sm:$0xff]
    %v204 = vld [vmem:[#allocation6 + $0x310] sm:$0xff]
    %v205 = vld [vmem:[#allocation6 + $0x318] sm:$0xff]
    %v206 = vld [vmem:[#allocation6 + $0x320] sm:$0xff]
    %v207 = vld [vmem:[#allocation6 + $0x328] sm:$0xff]
    %v208 = vld [vmem:[#allocation6 + $0x330] sm:$0xff]
    %v209 = vld [vmem:[#allocation6 + $0x338] sm:$0xff]
    %v210 = vld [vmem:[#allocation6 + $0x340] sm:$0xff]
    %v211 = vld [vmem:[#allocation6 + $0x348] sm:$0xff]
    %v212 = vld [vmem:[#allocation6 + $0x350] sm:$0xff]
    %v213 = vld [vmem:[#allocation6 + $0x358] sm:$0xff]
    %v214 = vld [vmem:[#allocation6 + $0x360] sm:$0xff]
    %v215 = vld [vmem:[#allocation6 + $0x368] sm:$0xff]
    %v216 = vld [vmem:[#allocation6 + $0x370] sm:$0xff]
    %v217 = vld [vmem:[#allocation6 + $0x378] sm:$0xff]
    %v218 = vld [vmem:[%s3] sm:$0x3]
    %v220 = vperm.slane %v218, 0
    %v221 = vperm.slane %v218, 1
    %v336 = vunpack.c.l.b16 %v106
    %v337 = vunpack.c.h.b16 %v106
    %v338 = vunpack.c.l.b16 %v107
    %v339 = vunpack.c.h.b16 %v107
    %v340 = vunpack.c.l.b16 %v108
    %v341 = vunpack.c.h.b16 %v108
    %v342 = vunpack.c.l.b16 %v109
    %v343 = vunpack.c.h.b16 %v109
    %v344 = vunpack.c.l.b16 %v110
    %v345 = vunpack.c.h.b16 %v110
    %v346 = vunpack.c.l.b16 %v111
    %v347 = vunpack.c.h.b16 %v111
    %v348 = vunpack.c.l.b16 %v112
    %v349 = vunpack.c.h.b16 %v112
    %v350 = vunpack.c.l.b16 %v113
    %v351 = vunpack.c.h.b16 %v113
    %v352 = vunpack.c.l.b16 %v114
    %v353 = vunpack.c.h.b16 %v114
    %v354 = vunpack.c.l.b16 %v115
    %v355 = vunpack.c.h.b16 %v115
    %v356 = vunpack.c.l.b16 %v116
    %v357 = vunpack.c.h.b16 %v116
    %v358 = vunpack.c.l.b16 %v117
    %v359 = vunpack.c.h.b16 %v117
    %v360 = vunpack.c.l.b16 %v118
    %v361 = vunpack.c.h.b16 %v118
    %v362 = vunpack.c.l.b16 %v119
    %v363 = vunpack.c.h.b16 %v119
    %v364 = vunpack.c.l.b16 %v120
    %v365 = vunpack.c.h.b16 %v120
    %v366 = vunpack.c.l.b16 %v121
    %v367 = vunpack.c.h.b16 %v121
    %v368 = vunpack.c.l.b16 %v122
    %v369 = vunpack.c.h.b16 %v122
    %v370 = vunpack.c.l.b16 %v123
    %v371 = vunpack.c.h.b16 %v123
    %v372 = vunpack.c.l.b16 %v124
    %v373 = vunpack.c.h.b16 %v124
    %v374 = vunpack.c.l.b16 %v125
    %v375 = vunpack.c.h.b16 %v125
    %v376 = vunpack.c.l.b16 %v126
    %v377 = vunpack.c.h.b16 %v126
    %v378 = vunpack.c.l.b16 %v127
    %v379 = vunpack.c.h.b16 %v127
    %v380 = vunpack.c.l.b16 %v128
    %v381 = vunpack.c.h.b16 %v128
    %v382 = vunpack.c.l.b16 %v129
    %v383 = vunpack.c.h.b16 %v129
    %v384 = vunpack.c.l.b16 %v130
    %v385 = vunpack.c.h.b16 %v130
    %v386 = vunpack.c.l.b16 %v131
    %v387 = vunpack.c.h.b16 %v131
    %v388 = vunpack.c.l.b16 %v132
    %v389 = vunpack.c.h.b16 %v132
    %v390 = vunpack.c.l.b16 %v133
    %v391 = vunpack.c.h.b16 %v133
    %v392 = vunpack.c.l.b16 %v134
    %v393 = vunpack.c.h.b16 %v134
    %v394 = vunpack.c.l.b16 %v135
    %v395 = vunpack.c.h.b16 %v135
    %v396 = vunpack.c.l.b16 %v136
    %v397 = vunpack.c.h.b16 %v136
    %v398 = vunpack.c.l.b16 %v137
    %v399 = vunpack.c.h.b16 %v137
    %v400 = vunpack.c.l.b16 %v138
    %v401 = vunpack.c.h.b16 %v138
    %v402 = vunpack.c.l.b16 %v139
    %v403 = vunpack.c.h.b16 %v139
    %v404 = vunpack.c.l.b16 %v140
    %v405 = vunpack.c.h.b16 %v140
    %v406 = vunpack.c.l.b16 %v141
    %v407 = vunpack.c.h.b16 %v141
    %v408 = vunpack.c.l.b16 %v142
    %v409 = vunpack.c.h.b16 %v142
    %v410 = vunpack.c.l.b16 %v143
    %v411 = vunpack.c.h.b16 %v143
    %v412 = vunpack.c.l.b16 %v144
    %v413 = vunpack.c.h.b16 %v144
    %v414 = vunpack.c.l.b16 %v145
    %v415 = vunpack.c.h.b16 %v145
    %v416 = vunpack.c.l.b16 %v146
    %v417 = vunpack.c.h.b16 %v146
    %v418 = vunpack.c.l.b16 %v147
    %v419 = vunpack.c.h.b16 %v147
    %v420 = vunpack.c.l.b16 %v148
    %v421 = vunpack.c.h.b16 %v148
    %v422 = vunpack.c.l.b16 %v149
    %v423 = vunpack.c.h.b16 %v149
    %v424 = vunpack.c.l.b16 %v150
    %v425 = vunpack.c.h.b16 %v150
    %v426 = vunpack.c.l.b16 %v151
    %v427 = vunpack.c.h.b16 %v151
    %v428 = vunpack.c.l.b16 %v152
    %v429 = vunpack.c.h.b16 %v152
    %v430 = vunpack.c.l.b16 %v153
    %v431 = vunpack.c.h.b16 %v153
    %v432 = vunpack.c.l.b16 %v154
    %v433 = vunpack.c.h.b16 %v154
    %v434 = vunpack.c.l.b16 %v155
    %v435 = vunpack.c.h.b16 %v155
    %v436 = vunpack.c.l.b16 %v156
    %v437 = vunpack.c.h.b16 %v156
    %v438 = vunpack.c.l.b16 %v157
    %v439 = vunpack.c.h.b16 %v157
    %v440 = vunpack.c.l.b16 %v158
    %v441 = vunpack.c.h.b16 %v158
    %v442 = vunpack.c.l.b16 %v159
    %v443 = vunpack.c.h.b16 %v159
    %v444 = vunpack.c.l.b16 %v160
    %v445 = vunpack.c.h.b16 %v160
    %v446 = vunpack.c.l.b16 %v161
    %v447 = vunpack.c.h.b16 %v161
    %v448 = vunpack.c.l.b16 %v162
    %v449 = vunpack.c.h.b16 %v162
    %v450 = vunpack.c.l.b16 %v163
    %v451 = vunpack.c.h.b16 %v163
    %v452 = vunpack.c.l.b16 %v164
    %v453 = vunpack.c.h.b16 %v164
    %v454 = vunpack.c.l.b16 %v165
    %v455 = vunpack.c.h.b16 %v165
    %v456 = vunpack.c.l.b16 %v166
    %v457 = vunpack.c.h.b16 %v166
    %v458 = vunpack.c.l.b16 %v167
    %v459 = vunpack.c.h.b16 %v167
    %v460 = vunpack.c.l.b16 %v168
    %v461 = vunpack.c.h.b16 %v168
    %v462 = vunpack.c.l.b16 %v169
    %v463 = vunpack.c.h.b16 %v169
    %v464 = vunpack.c.l.b16 %v170
    %v465 = vunpack.c.h.b16 %v170
    %v466 = vunpack.c.l.b16 %v171
    %v467 = vunpack.c.h.b16 %v171
    %v468 = vunpack.c.l.b16 %v172
    %v469 = vunpack.c.h.b16 %v172
    %v470 = vunpack.c.l.b16 %v173
    %v471 = vunpack.c.h.b16 %v173
    %v472 = vunpack.c.l.b16 %v174
    %v473 = vunpack.c.h.b16 %v174
    %v474 = vunpack.c.l.b16 %v175
    %v475 = vunpack.c.h.b16 %v175
    %v476 = vunpack.c.l.b16 %v176
    %v477 = vunpack.c.h.b16 %v176
    %v478 = vunpack.c.l.b16 %v177
    %v479 = vunpack.c.h.b16 %v177
    %v480 = vunpack.c.l.b16 %v178
    %v481 = vunpack.c.h.b16 %v178
    %v482 = vunpack.c.l.b16 %v179
    %v483 = vunpack.c.h.b16 %v179
    %v484 = vunpack.c.l.b16 %v180
    %v485 = vunpack.c.h.b16 %v180
    %v486 = vunpack.c.l.b16 %v181
    %v487 = vunpack.c.h.b16 %v181
    %v488 = vunpack.c.l.b16 %v182
    %v489 = vunpack.c.h.b16 %v182
    %v490 = vunpack.c.l.b16 %v183
    %v491 = vunpack.c.h.b16 %v183
    %v492 = vunpack.c.l.b16 %v184
    %v493 = vunpack.c.h.b16 %v184
    %v494 = vunpack.c.l.b16 %v185
    %v495 = vunpack.c.h.b16 %v185
    %v496 = vunpack.c.l.b16 %v186
    %v497 = vunpack.c.h.b16 %v186
    %v498 = vunpack.c.l.b16 %v187
    %v499 = vunpack.c.h.b16 %v187
    %v500 = vunpack.c.l.b16 %v188
    %v501 = vunpack.c.h.b16 %v188
    %v502 = vunpack.c.l.b16 %v189
    %v503 = vunpack.c.h.b16 %v189
    %v504 = vunpack.c.l.b16 %v190
    %v505 = vunpack.c.h.b16 %v190
    %v506 = vunpack.c.l.b16 %v191
    %v507 = vunpack.c.h.b16 %v191
    %v508 = vunpack.c.l.b16 %v192
    %v509 = vunpack.c.h.b16 %v192
    %v510 = vunpack.c.l.b16 %v193
    %v511 = vunpack.c.h.b16 %v193
    %v512 = vunpack.c.l.b16 %v194
    %v513 = vunpack.c.h.b16 %v194
    %v514 = vunpack.c.l.b16 %v195
    %v515 = vunpack.c.h.b16 %v195
    %v516 = vunpack.c.l.b16 %v196
    %v517 = vunpack.c.h.b16 %v196
    %v518 = vunpack.c.l.b16 %v197
    %v519 = vunpack.c.h.b16 %v197
    %v520 = vunpack.c.l.b16 %v198
    %v521 = vunpack.c.h.b16 %v198
    %v522 = vunpack.c.l.b16 %v199
    %v523 = vunpack.c.h.b16 %v199
    %v524 = vunpack.c.l.b16 %v200
    %v525 = vunpack.c.h.b16 %v200
    %v526 = vunpack.c.l.b16 %v201
    %v527 = vunpack.c.h.b16 %v201
    %v528 = vunpack.c.l.b16 %v202
    %v529 = vunpack.c.h.b16 %v202
    %v530 = vunpack.c.l.b16 %v203
    %v531 = vunpack.c.h.b16 %v203
    %v532 = vunpack.c.l.b16 %v204
    %v533 = vunpack.c.h.b16 %v204
    %v534 = vunpack.c.l.b16 %v205
    %v535 = vunpack.c.h.b16 %v205
    %v536 = vunpack.c.l.b16 %v206
    %v537 = vunpack.c.h.b16 %v206
    %v538 = vunpack.c.l.b16 %v207
    %v539 = vunpack.c.h.b16 %v207
    %v540 = vunpack.c.l.b16 %v208
    %v541 = vunpack.c.h.b16 %v208
    %v542 = vunpack.c.l.b16 %v209
    %v543 = vunpack.c.h.b16 %v209
    %v544 = vunpack.c.l.b16 %v210
    %v545 = vunpack.c.h.b16 %v210
    %v546 = vunpack.c.l.b16 %v211
    %v547 = vunpack.c.h.b16 %v211
    %v548 = vunpack.c.l.b16 %v212
    %v549 = vunpack.c.h.b16 %v212
    %v550 = vunpack.c.l.b16 %v213
    %v551 = vunpack.c.h.b16 %v213
    %v552 = vunpack.c.l.b16 %v214
    %v553 = vunpack.c.h.b16 %v214
    %v554 = vunpack.c.l.b16 %v215
    %v555 = vunpack.c.h.b16 %v215
    %v556 = vunpack.c.l.b16 %v216
    %v557 = vunpack.c.h.b16 %v216
    %v558 = vunpack.c.l.b16 %v217
    %v559 = vunpack.c.h.b16 %v217
    %v560 = vpack.c.b16 %v338, %v336
    %v561 = vpack.c.b16 %v339, %v337
    %v562 = vpack.c.b16 %v342, %v340
    %v563 = vpack.c.b16 %v343, %v341
    %v564 = vpack.c.b16 %v346, %v344
    %v565 = vpack.c.b16 %v347, %v345
    %v566 = vpack.c.b16 %v350, %v348
    %v567 = vpack.c.b16 %v351, %v349
    %v568 = vpack.c.b16 %v354, %v352
    %v569 = vpack.c.b16 %v355, %v353
    %v570 = vpack.c.b16 %v358, %v356
    %v571 = vpack.c.b16 %v359, %v357
    %v572 = vpack.c.b16 %v362, %v360
    %v573 = vpack.c.b16 %v363, %v361
    %v574 = vpack.c.b16 %v366, %v364
    %v575 = vpack.c.b16 %v367, %v365
    %v576 = vpack.c.b16 %v370, %v368
    %v577 = vpack.c.b16 %v371, %v369
    %v578 = vpack.c.b16 %v374, %v372
    %v579 = vpack.c.b16 %v375, %v373
    %v580 = vpack.c.b16 %v378, %v376
    %v581 = vpack.c.b16 %v379, %v377
    %v582 = vpack.c.b16 %v382, %v380
    %v583 = vpack.c.b16 %v383, %v381
    %v584 = vpack.c.b16 %v386, %v384
    %v585 = vpack.c.b16 %v387, %v385
    %v586 = vpack.c.b16 %v390, %v388
    %v587 = vpack.c.b16 %v391, %v389
    %v588 = vpack.c.b16 %v394, %v392
    %v589 = vpack.c.b16 %v395, %v393
    %v590 = vpack.c.b16 %v398, %v396
    %v591 = vpack.c.b16 %v399, %v397
    %v592 = vpack.c.b16 %v402, %v400
    %v593 = vpack.c.b16 %v403, %v401
    %v594 = vpack.c.b16 %v406, %v404
    %v595 = vpack.c.b16 %v407, %v405
    %v596 = vpack.c.b16 %v410, %v408
    %v597 = vpack.c.b16 %v411, %v409
    %v598 = vpack.c.b16 %v414, %v412
    %v599 = vpack.c.b16 %v415, %v413
    %v600 = vpack.c.b16 %v418, %v416
    %v601 = vpack.c.b16 %v419, %v417
    %v602 = vpack.c.b16 %v422, %v420
    %v603 = vpack.c.b16 %v423, %v421
    %v604 = vpack.c.b16 %v426, %v424
    %v605 = vpack.c.b16 %v427, %v425
    %v606 = vpack.c.b16 %v430, %v428
    %v607 = vpack.c.b16 %v431, %v429
    %v608 = vpack.c.b16 %v434, %v432
    %v609 = vpack.c.b16 %v435, %v433
    %v610 = vpack.c.b16 %v438, %v436
    %v611 = vpack.c.b16 %v439, %v437
    %v612 = vpack.c.b16 %v442, %v440
    %v613 = vpack.c.b16 %v443, %v441
    %v614 = vpack.c.b16 %v446, %v444
    %v615 = vpack.c.b16 %v447, %v445
    %v616 = vpack.c.b16 %v450, %v448
    %v617 = vpack.c.b16 %v451, %v449
    %v618 = vpack.c.b16 %v454, %v452
    %v619 = vpack.c.b16 %v455, %v453
    %v620 = vpack.c.b16 %v458, %v456
    %v621 = vpack.c.b16 %v459, %v457
    %v622 = vpack.c.b16 %v462, %v460
    %v623 = vpack.c.b16 %v463, %v461
    %v624 = vpack.c.b16 %v466, %v464
    %v625 = vpack.c.b16 %v467, %v465
    %v626 = vpack.c.b16 %v470, %v468
    %v627 = vpack.c.b16 %v471, %v469
    %v628 = vpack.c.b16 %v474, %v472
    %v629 = vpack.c.b16 %v475, %v473
    %v630 = vpack.c.b16 %v478, %v476
    %v631 = vpack.c.b16 %v479, %v477
    %v632 = vpack.c.b16 %v482, %v480
    %v633 = vpack.c.b16 %v483, %v481
    %v634 = vpack.c.b16 %v486, %v484
    %v635 = vpack.c.b16 %v487, %v485
    %v636 = vpack.c.b16 %v490, %v488
    %v637 = vpack.c.b16 %v491, %v489
    %v638 = vpack.c.b16 %v494, %v492
    %v639 = vpack.c.b16 %v495, %v493
    %v640 = vpack.c.b16 %v498, %v496
    %v641 = vpack.c.b16 %v499, %v497
    %v642 = vpack.c.b16 %v502, %v500
    %v643 = vpack.c.b16 %v503, %v501
    %v644 = vpack.c.b16 %v506, %v504
    %v645 = vpack.c.b16 %v507, %v505
    %v646 = vpack.c.b16 %v510, %v508
    %v647 = vpack.c.b16 %v511, %v509
    %v648 = vpack.c.b16 %v514, %v512
    %v649 = vpack.c.b16 %v515, %v513
    %v650 = vpack.c.b16 %v518, %v516
    %v651 = vpack.c.b16 %v519, %v517
    %v652 = vpack.c.b16 %v522, %v520
    %v653 = vpack.c.b16 %v523, %v521
    %v654 = vpack.c.b16 %v526, %v524
    %v655 = vpack.c.b16 %v527, %v525
    %v656 = vpack.c.b16 %v530, %v528
    %v657 = vpack.c.b16 %v531, %v529
    %v658 = vpack.c.b16 %v534, %v532
    %v659 = vpack.c.b16 %v535, %v533
    %v660 = vpack.c.b16 %v538, %v536
    %v661 = vpack.c.b16 %v539, %v537
    %v662 = vpack.c.b16 %v542, %v540
    %v663 = vpack.c.b16 %v543, %v541
    %v664 = vpack.c.b16 %v546, %v544
    %v665 = vpack.c.b16 %v547, %v545
    %v666 = vpack.c.b16 %v550, %v548
    %v667 = vpack.c.b16 %v551, %v549
    %v668 = vpack.c.b16 %v554, %v552
    %v669 = vpack.c.b16 %v555, %v553
    %v670 = vpack.c.b16 %v558, %v556
    %v671 = vpack.c.b16 %v559, %v557
    %784 = vmatpush.bf16.msra.mxu0 %v574
    %785 = vmatpush.bf16.msra.mxu0 %v572
    %786 = vmatpush.bf16.msra.mxu0 %v570
    %787 = vmatpush.bf16.msra.mxu0 %v568
    %788 = vmatpush.bf16.msra.mxu0 %v566
    %789 = vmatpush.bf16.msra.mxu0 %v564
    %790 = vmatpush.bf16.msra.mxu0 %v562
    %791 = vmatpush.bf16.msra.mxu0 %v560
    %792 = vmatmul.bf16.gmra.mxu0 %v99
    %v793 = vpop.f32.mrf.mxu0
    %v794 = vadd.f32 %v220, %v793
    %v795 = vpop.f32.mrf.mxu0
    %796 = vdwg.mxu0
    %797 = vmatpush.bf16.msra.mxu0 %v590
    %798 = vmatpush.bf16.msra.mxu0 %v588
    %799 = vmatpush.bf16.msra.mxu0 %v586
    %800 = vmatpush.bf16.msra.mxu0 %v584
    %801 = vmatpush.bf16.msra.mxu0 %v582
    %802 = vmatpush.bf16.msra.mxu0 %v580
    %803 = vmatpush.bf16.msra.mxu0 %v578
    %804 = vmatpush.bf16.msra.mxu0 %v576
    %805 = vmatmul.bf16.gmra.mxu0 %v100
    %v806 = vpop.f32.mrf.mxu0
    %v807 = vadd.f32 %v794, %v806
    %v808 = vpop.f32.mrf.mxu0
    %809 = vdwg.mxu0
    %810 = vmatpush.bf16.msra.mxu0 %v606
    %811 = vmatpush.bf16.msra.mxu0 %v604
    %812 = vmatpush.bf16.msra.mxu0 %v602
    %813 = vmatpush.bf16.msra.mxu0 %v600
    %814 = vmatpush.bf16.msra.mxu0 %v598
    %815 = vmatpush.bf16.msra.mxu0 %v596
    %816 = vmatpush.bf16.msra.mxu0 %v594
    %817 = vmatpush.bf16.msra.mxu0 %v592
    %818 = vmatmul.bf16.gmra.mxu0 %v101
    %v819 = vpop.f32.mrf.mxu0
    %v820 = vadd.f32 %v807, %v819
    %v821 = vpop.f32.mrf.mxu0
    %822 = vdwg.mxu0
    %823 = vmatpush.bf16.msra.mxu0 %v622
    %824 = vmatpush.bf16.msra.mxu0 %v620
    %825 = vmatpush.bf16.msra.mxu0 %v618
    %826 = vmatpush.bf16.msra.mxu0 %v616
    %827 = vmatpush.bf16.msra.mxu0 %v614
    %828 = vmatpush.bf16.msra.mxu0 %v612
    %829 = vmatpush.bf16.msra.mxu0 %v610
    %830 = vmatpush.bf16.msra.mxu0 %v608
    %831 = vmatmul.bf16.gmra.mxu0 %v102
    %v832 = vpop.f32.mrf.mxu0
    %v833 = vadd.f32 %v820, %v832
    %v834 = vpop.f32.mrf.mxu0
    %835 = vdwg.mxu0
    %836 = vmatpush.bf16.msra.mxu0 %v638
    %837 = vmatpush.bf16.msra.mxu0 %v636
    %838 = vmatpush.bf16.msra.mxu0 %v634
    %839 = vmatpush.bf16.msra.mxu0 %v632
    %840 = vmatpush.bf16.msra.mxu0 %v630
    %841 = vmatpush.bf16.msra.mxu0 %v628
    %842 = vmatpush.bf16.msra.mxu0 %v626
    %843 = vmatpush.bf16.msra.mxu0 %v624
    %844 = vmatmul.bf16.gmra.mxu0 %v103
    %v845 = vpop.f32.mrf.mxu0
    %v846 = vadd.f32 %v833, %v845
    %v847 = vpop.f32.mrf.mxu0
    %848 = vdwg.mxu0
    %849 = vmatpush.bf16.msra.mxu0 %v654
    %850 = vmatpush.bf16.msra.mxu0 %v652
    %851 = vmatpush.bf16.msra.mxu0 %v650
    %852 = vmatpush.bf16.msra.mxu0 %v648
    %853 = vmatpush.bf16.msra.mxu0 %v646
    %854 = vmatpush.bf16.msra.mxu0 %v644
    %855 = vmatpush.bf16.msra.mxu0 %v642
    %856 = vmatpush.bf16.msra.mxu0 %v640
    %857 = vmatmul.bf16.gmra.mxu0 %v104
    %v858 = vpop.f32.mrf.mxu0
    %v859 = vadd.f32 %v846, %v858
    %v860 = vpop.f32.mrf.mxu0
    %861 = vdwg.mxu0
    %862 = vmatpush.bf16.msra.mxu0 %v670
    %863 = vmatpush.bf16.msra.mxu0 %v668
    %864 = vmatpush.bf16.msra.mxu0 %v666
    %865 = vmatpush.bf16.msra.mxu0 %v664
    %866 = vmatpush.bf16.msra.mxu0 %v662
    %867 = vmatpush.bf16.msra.mxu0 %v660
    %868 = vmatpush.bf16.msra.mxu0 %v658
    %869 = vmatpush.bf16.msra.mxu0 %v656
    %870 = vmatmul.bf16.gmra.mxu0 %v105
    %v871 = vpop.f32.mrf.mxu0
    %v872 = vadd.f32 %v859, %v871
    %v873 = vpop.f32.mrf.mxu0
    %874 = vdwg.mxu0
    %875 = vmatpush.bf16.msra.mxu0 %v575
    %876 = vmatpush.bf16.msra.mxu0 %v573
    %877 = vmatpush.bf16.msra.mxu0 %v571
    %878 = vmatpush.bf16.msra.mxu0 %v569
    %879 = vmatpush.bf16.msra.mxu0 %v567
    %880 = vmatpush.bf16.msra.mxu0 %v565
    %881 = vmatpush.bf16.msra.mxu0 %v563
    %882 = vmatpush.bf16.msra.mxu0 %v561
    %883 = vmatmul.bf16.gmra.mxu0 %v99
    %v884 = vpop.f32.mrf.mxu0
    %v885 = vadd.f32 %v221, %v884
    %v886 = vpop.f32.mrf.mxu0
    %887 = vdwg.mxu0
    %888 = vmatpush.bf16.msra.mxu0 %v591
    %889 = vmatpush.bf16.msra.mxu0 %v589
    %890 = vmatpush.bf16.msra.mxu0 %v587
    %891 = vmatpush.bf16.msra.mxu0 %v585
    %892 = vmatpush.bf16.msra.mxu0 %v583
    %893 = vmatpush.bf16.msra.mxu0 %v581
    %894 = vmatpush.bf16.msra.mxu0 %v579
    %895 = vmatpush.bf16.msra.mxu0 %v577
    %896 = vmatmul.bf16.gmra.mxu0 %v100
    %v897 = vpop.f32.mrf.mxu0
    %v898 = vadd.f32 %v885, %v897
    %v899 = vpop.f32.mrf.mxu0
    %900 = vdwg.mxu0
    %901 = vmatpush.bf16.msra.mxu0 %v607
    %902 = vmatpush.bf16.msra.mxu0 %v605
    %903 = vmatpush.bf16.msra.mxu0 %v603
    %904 = vmatpush.bf16.msra.mxu0 %v601
    %905 = vmatpush.bf16.msra.mxu0 %v599
    %906 = vmatpush.bf16.msra.mxu0 %v597
    %907 = vmatpush.bf16.msra.mxu0 %v595
    %908 = vmatpush.bf16.msra.mxu0 %v593
    %909 = vmatmul.bf16.gmra.mxu0 %v101
    %v910 = vpop.f32.mrf.mxu0
    %v911 = vadd.f32 %v898, %v910
    %v912 = vpop.f32.mrf.mxu0
    %913 = vdwg.mxu0
    %914 = vmatpush.bf16.msra.mxu0 %v623
    %915 = vmatpush.bf16.msra.mxu0 %v621
    %916 = vmatpush.bf16.msra.mxu0 %v619
    %917 = vmatpush.bf16.msra.mxu0 %v617
    %918 = vmatpush.bf16.msra.mxu0 %v615
    %919 = vmatpush.bf16.msra.mxu0 %v613
    %920 = vmatpush.bf16.msra.mxu0 %v611
    %921 = vmatpush.bf16.msra.mxu0 %v609
    %922 = vmatmul.bf16.gmra.mxu0 %v102
    %v923 = vpop.f32.mrf.mxu0
    %v924 = vadd.f32 %v911, %v923
    %v925 = vpop.f32.mrf.mxu0
    %926 = vdwg.mxu0
    %927 = vmatpush.bf16.msra.mxu0 %v639
    %928 = vmatpush.bf16.msra.mxu0 %v637
    %929 = vmatpush.bf16.msra.mxu0 %v635
    %930 = vmatpush.bf16.msra.mxu0 %v633
    %931 = vmatpush.bf16.msra.mxu0 %v631
    %932 = vmatpush.bf16.msra.mxu0 %v629
    %933 = vmatpush.bf16.msra.mxu0 %v627
    %934 = vmatpush.bf16.msra.mxu0 %v625
    %935 = vmatmul.bf16.gmra.mxu0 %v103
    %v936 = vpop.f32.mrf.mxu0
    %v937 = vadd.f32 %v924, %v936
    %v938 = vpop.f32.mrf.mxu0
    %939 = vdwg.mxu0
    %940 = vmatpush.bf16.msra.mxu0 %v655
    %941 = vmatpush.bf16.msra.mxu0 %v653
    %942 = vmatpush.bf16.msra.mxu0 %v651
    %943 = vmatpush.bf16.msra.mxu0 %v649
    %944 = vmatpush.bf16.msra.mxu0 %v647
    %945 = vmatpush.bf16.msra.mxu0 %v645
    %946 = vmatpush.bf16.msra.mxu0 %v643
    %947 = vmatpush.bf16.msra.mxu0 %v641
    %948 = vmatmul.bf16.gmra.mxu0 %v104
    %v949 = vpop.f32.mrf.mxu0
    %v950 = vadd.f32 %v937, %v949
    %v951 = vpop.f32.mrf.mxu0
    %952 = vdwg.mxu0
    %953 = vmatpush.bf16.msra.mxu0 %v671
    %954 = vmatpush.bf16.msra.mxu0 %v669
    %955 = vmatpush.bf16.msra.mxu0 %v667
    %956 = vmatpush.bf16.msra.mxu0 %v665
    %957 = vmatpush.bf16.msra.mxu0 %v663
    %958 = vmatpush.bf16.msra.mxu0 %v661
    %959 = vmatpush.bf16.msra.mxu0 %v659
    %960 = vmatpush.bf16.msra.mxu0 %v657
    %961 = vmatmul.bf16.gmra.mxu0 %v105
    %v962 = vpop.f32.mrf.mxu0
    %v963 = vadd.f32 %v950, %v962
    %v964 = vpop.f32.mrf.mxu0
    %965 = vdwg.mxu0
    %v966 = vmax.f32 %v872, 0.0
    %v967 = vmax.f32 %v963, 0.0
    %v968 = vpack.c.bf16 %v966, %v966
    %v969 = vpack.c.bf16 %v967, %v967
    %v970 = vld [vmem:[#allocation8] sm:$0xff]
    %v971 = vld [vmem:[#allocation8 + $0x8] sm:$0xff]
    %v972 = vld [vmem:[#allocation8 + $0x10] sm:$0xff]
    %v973 = vld [vmem:[#allocation8 + $0x18] sm:$0xff]
    %v974 = vld [vmem:[#allocation8 + $0x20] sm:$0xff]
    %v975 = vld [vmem:[#allocation8 + $0x28] sm:$0xff]
    %v976 = vld [vmem:[#allocation8 + $0x30] sm:$0xff]
    %v977 = vld [vmem:[#allocation8 + $0x38] sm:$0xff]
    %v978 = vld [vmem:[#allocation8 + $0x40] sm:$0xff]
    %v979 = vld [vmem:[#allocation8 + $0x48] sm:$0xff]
    %v980 = vld [vmem:[#allocation8 + $0x50] sm:$0xff]
    %v981 = vld [vmem:[#allocation8 + $0x58] sm:$0xff]
    %v982 = vld [vmem:[#allocation8 + $0x60] sm:$0xff]
    %v983 = vld [vmem:[#allocation8 + $0x68] sm:$0xff]
    %v984 = vld [vmem:[#allocation8 + $0x70] sm:$0xff]
    %v985 = vld [vmem:[#allocation8 + $0x78] sm:$0xff]
    %v986 = vld [vmem:[#allocation8 + $0x80] sm:$0xff]
    %v987 = vld [vmem:[#allocation8 + $0x88] sm:$0xff]
    %v988 = vld [vmem:[#allocation8 + $0x90] sm:$0xff]
    %v989 = vld [vmem:[#allocation8 + $0x98] sm:$0xff]
    %v990 = vld [vmem:[#allocation8 + $0xa0] sm:$0xff]
    %v991 = vld [vmem:[#allocation8 + $0xa8] sm:$0xff]
    %v992 = vld [vmem:[#allocation8 + $0xb0] sm:$0xff]
    %v993 = vld [vmem:[#allocation8 + $0xb8] sm:$0xff]
    %v994 = vld [vmem:[#allocation8 + $0xc0] sm:$0xff]
    %v995 = vld [vmem:[#allocation8 + $0xc8] sm:$0xff]
    %v996 = vld [vmem:[#allocation8 + $0xd0] sm:$0xff]
    %v997 = vld [vmem:[#allocation8 + $0xd8] sm:$0xff]
    %v998 = vld [vmem:[#allocation8 + $0xe0] sm:$0xff]
    %v999 = vld [vmem:[#allocation8 + $0xe8] sm:$0xff]
    %v1000 = vld [vmem:[#allocation8 + $0xf0] sm:$0xff]
    %v1001 = vld [vmem:[#allocation8 + $0xf8] sm:$0xff]
    %v1002 = vld [vmem:[%s5] sm:$0x3]
    %v1004 = vperm.slane %v1002, 0
    %v1005 = vperm.slane %v1002, 1
    %v1040 = vunpack.c.l.b16 %v970
    %v1041 = vunpack.c.h.b16 %v970
    %v1042 = vunpack.c.l.b16 %v971
    %v1043 = vunpack.c.h.b16 %v971
    %v1044 = vunpack.c.l.b16 %v972
    %v1045 = vunpack.c.h.b16 %v972
    %v1046 = vunpack.c.l.b16 %v973
    %v1047 = vunpack.c.h.b16 %v973
    %v1048 = vunpack.c.l.b16 %v974
    %v1049 = vunpack.c.h.b16 %v974
    %v1050 = vunpack.c.l.b16 %v975
    %v1051 = vunpack.c.h.b16 %v975
    %v1052 = vunpack.c.l.b16 %v976
    %v1053 = vunpack.c.h.b16 %v976
    %v1054 = vunpack.c.l.b16 %v977
    %v1055 = vunpack.c.h.b16 %v977
    %v1056 = vunpack.c.l.b16 %v978
    %v1057 = vunpack.c.h.b16 %v978
    %v1058 = vunpack.c.l.b16 %v979
    %v1059 = vunpack.c.h.b16 %v979
    %v1060 = vunpack.c.l.b16 %v980
    %v1061 = vunpack.c.h.b16 %v980
    %v1062 = vunpack.c.l.b16 %v981
    %v1063 = vunpack.c.h.b16 %v981
    %v1064 = vunpack.c.l.b16 %v982
    %v1065 = vunpack.c.h.b16 %v982
    %v1066 = vunpack.c.l.b16 %v983
    %v1067 = vunpack.c.h.b16 %v983
    %v1068 = vunpack.c.l.b16 %v984
    %v1069 = vunpack.c.h.b16 %v984
    %v1070 = vunpack.c.l.b16 %v985
    %v1071 = vunpack.c.h.b16 %v985
    %v1072 = vunpack.c.l.b16 %v986
    %v1073 = vunpack.c.h.b16 %v986
    %v1074 = vunpack.c.l.b16 %v987
    %v1075 = vunpack.c.h.b16 %v987
    %v1076 = vunpack.c.l.b16 %v988
    %v1077 = vunpack.c.h.b16 %v988
    %v1078 = vunpack.c.l.b16 %v989
    %v1079 = vunpack.c.h.b16 %v989
    %v1080 = vunpack.c.l.b16 %v990
    %v1081 = vunpack.c.h.b16 %v990
    %v1082 = vunpack.c.l.b16 %v991
    %v1083 = vunpack.c.h.b16 %v991
    %v1084 = vunpack.c.l.b16 %v992
    %v1085 = vunpack.c.h.b16 %v992
    %v1086 = vunpack.c.l.b16 %v993
    %v1087 = vunpack.c.h.b16 %v993
    %v1088 = vunpack.c.l.b16 %v994
    %v1089 = vunpack.c.h.b16 %v994
    %v1090 = vunpack.c.l.b16 %v995
    %v1091 = vunpack.c.h.b16 %v995
    %v1092 = vunpack.c.l.b16 %v996
    %v1093 = vunpack.c.h.b16 %v996
    %v1094 = vunpack.c.l.b16 %v997
    %v1095 = vunpack.c.h.b16 %v997
    %v1096 = vunpack.c.l.b16 %v998
    %v1097 = vunpack.c.h.b16 %v998
    %v1098 = vunpack.c.l.b16 %v999
    %v1099 = vunpack.c.h.b16 %v999
    %v1100 = vunpack.c.l.b16 %v1000
    %v1101 = vunpack.c.h.b16 %v1000
    %v1102 = vunpack.c.l.b16 %v1001
    %v1103 = vunpack.c.h.b16 %v1001
    %v1104 = vpack.c.b16 %v1042, %v1040
    %v1105 = vpack.c.b16 %v1043, %v1041
    %v1106 = vpack.c.b16 %v1046, %v1044
    %v1107 = vpack.c.b16 %v1047, %v1045
    %v1108 = vpack.c.b16 %v1050, %v1048
    %v1109 = vpack.c.b16 %v1051, %v1049
    %v1110 = vpack.c.b16 %v1054, %v1052
    %v1111 = vpack.c.b16 %v1055, %v1053
    %v1112 = vpack.c.b16 %v1058, %v1056
    %v1113 = vpack.c.b16 %v1059, %v1057
    %v1114 = vpack.c.b16 %v1062, %v1060
    %v1115 = vpack.c.b16 %v1063, %v1061
    %v1116 = vpack.c.b16 %v1066, %v1064
    %v1117 = vpack.c.b16 %v1067, %v1065
    %v1118 = vpack.c.b16 %v1070, %v1068
    %v1119 = vpack.c.b16 %v1071, %v1069
    %v1120 = vpack.c.b16 %v1074, %v1072
    %v1121 = vpack.c.b16 %v1075, %v1073
    %v1122 = vpack.c.b16 %v1078, %v1076
    %v1123 = vpack.c.b16 %v1079, %v1077
    %v1124 = vpack.c.b16 %v1082, %v1080
    %v1125 = vpack.c.b16 %v1083, %v1081
    %v1126 = vpack.c.b16 %v1086, %v1084
    %v1127 = vpack.c.b16 %v1087, %v1085
    %v1128 = vpack.c.b16 %v1090, %v1088
    %v1129 = vpack.c.b16 %v1091, %v1089
    %v1130 = vpack.c.b16 %v1094, %v1092
    %v1131 = vpack.c.b16 %v1095, %v1093
    %v1132 = vpack.c.b16 %v1098, %v1096
    %v1133 = vpack.c.b16 %v1099, %v1097
    %v1134 = vpack.c.b16 %v1102, %v1100
    %v1135 = vpack.c.b16 %v1103, %v1101
    %1168 = vmatpush.bf16.msra.mxu0 %v1118
    %1169 = vmatpush.bf16.msra.mxu0 %v1116
    %1170 = vmatpush.bf16.msra.mxu0 %v1114
    %1171 = vmatpush.bf16.msra.mxu0 %v1112
    %1172 = vmatpush.bf16.msra.mxu0 %v1110
    %1173 = vmatpush.bf16.msra.mxu0 %v1108
    %1174 = vmatpush.bf16.msra.mxu0 %v1106
    %1175 = vmatpush.bf16.msra.mxu0 %v1104
    %1176 = vmatmul.bf16.gmra.mxu0 %v968
    %v1177 = vpop.f32.mrf.mxu0
    %v1178 = vadd.f32 %v1004, %v1177
    %v1179 = vpop.f32.mrf.mxu0
    %1180 = vdwg.mxu0
    %1181 = vmatpush.bf16.msra.mxu0 %v1134
    %1182 = vmatpush.bf16.msra.mxu0 %v1132
    %1183 = vmatpush.bf16.msra.mxu0 %v1130
    %1184 = vmatpush.bf16.msra.mxu0 %v1128
    %1185 = vmatpush.bf16.msra.mxu0 %v1126
    %1186 = vmatpush.bf16.msra.mxu0 %v1124
    %1187 = vmatpush.bf16.msra.mxu0 %v1122
    %1188 = vmatpush.bf16.msra.mxu0 %v1120
    %1189 = vmatmul.bf16.gmra.mxu0 %v969
    %v1190 = vpop.f32.mrf.mxu0
    %v1191 = vadd.f32 %v1178, %v1190
    %v1192 = vpop.f32.mrf.mxu0
    %1193 = vdwg.mxu0
    %1194 = vmatpush.bf16.msra.mxu0 %v1119
    %1195 = vmatpush.bf16.msra.mxu0 %v1117
    %1196 = vmatpush.bf16.msra.mxu0 %v1115
    %1197 = vmatpush.bf16.msra.mxu0 %v1113
    %1198 = vmatpush.bf16.msra.mxu0 %v1111
    %1199 = vmatpush.bf16.msra.mxu0 %v1109
    %1200 = vmatpush.bf16.msra.mxu0 %v1107
    %1201 = vmatpush.bf16.msra.mxu0 %v1105
    %1202 = vmatmul.bf16.gmra.mxu0 %v968
    %v1203 = vpop.f32.mrf.mxu0
    %v1204 = vadd.f32 %v1005, %v1203
    %v1205 = vpop.f32.mrf.mxu0
    %1206 = vdwg.mxu0
    %1207 = vmatpush.bf16.msra.mxu0 %v1135
    %1208 = vmatpush.bf16.msra.mxu0 %v1133
    %1209 = vmatpush.bf16.msra.mxu0 %v1131
    %1210 = vmatpush.bf16.msra.mxu0 %v1129
    %1211 = vmatpush.bf16.msra.mxu0 %v1127
    %1212 = vmatpush.bf16.msra.mxu0 %v1125
    %1213 = vmatpush.bf16.msra.mxu0 %v1123
    %1214 = vmatpush.bf16.msra.mxu0 %v1121
    %1215 = vmatmul.bf16.gmra.mxu0 %v969
    %v1216 = vpop.f32.mrf.mxu0
    %v1217 = vadd.f32 %v1204, %v1216
    %v1218 = vpop.f32.mrf.mxu0
    %1219 = vdwg.mxu0
    %v1220 = vmax.f32 %v1191, 0.0
    %v1221 = vmax.f32 %v1217, 0.0
    %v1222 = vpack.c.bf16 %v1220, %v1220
    %v1223 = vpack.c.bf16 %v1221, %v1221
    %v1224 = vld [vmem:[#allocation9] sm:$0xf]
    %v1225 = vld [vmem:[#allocation9 + $0x4] sm:$0xf]
    %v1226 = vld [vmem:[#allocation9 + $0x8] sm:$0xf]
    %v1227 = vld [vmem:[#allocation9 + $0xc] sm:$0xf]
    %v1228 = vld [vmem:[#allocation9 + $0x10] sm:$0xf]
    %v1229 = vld [vmem:[#allocation9 + $0x14] sm:$0xf]
    %v1230 = vld [vmem:[#allocation9 + $0x18] sm:$0xf]
    %v1231 = vld [vmem:[#allocation9 + $0x1c] sm:$0xf]
    %v1232 = vld [vmem:[#allocation9 + $0x20] sm:$0xf]
    %v1233 = vld [vmem:[#allocation9 + $0x24] sm:$0xf]
    %v1234 = vld [vmem:[#allocation9 + $0x28] sm:$0xf]
    %v1235 = vld [vmem:[#allocation9 + $0x2c] sm:$0xf]
    %v1236 = vld [vmem:[#allocation9 + $0x30] sm:$0xf]
    %v1237 = vld [vmem:[#allocation9 + $0x34] sm:$0xf]
    %v1238 = vld [vmem:[#allocation9 + $0x38] sm:$0xf]
    %v1239 = vld [vmem:[#allocation9 + $0x3c] sm:$0xf]
    %v1240 = vld [vmem:[#allocation9 + $0x40] sm:$0xf]
    %v1241 = vld [vmem:[#allocation9 + $0x44] sm:$0xf]
    %v1242 = vld [vmem:[#allocation9 + $0x48] sm:$0xf]
    %v1243 = vld [vmem:[#allocation9 + $0x4c] sm:$0xf]
    %v1244 = vld [vmem:[#allocation9 + $0x50] sm:$0xf]
    %v1245 = vld [vmem:[#allocation9 + $0x54] sm:$0xf]
    %v1246 = vld [vmem:[#allocation9 + $0x58] sm:$0xf]
    %v1247 = vld [vmem:[#allocation9 + $0x5c] sm:$0xf]
    %v1248 = vld [vmem:[#allocation9 + $0x60] sm:$0xf]
    %v1249 = vld [vmem:[#allocation9 + $0x64] sm:$0xf]
    %v1250 = vld [vmem:[#allocation9 + $0x68] sm:$0xf]
    %v1251 = vld [vmem:[#allocation9 + $0x6c] sm:$0xf]
    %v1252 = vld [vmem:[#allocation9 + $0x70] sm:$0xf]
    %v1253 = vld [vmem:[#allocation9 + $0x74] sm:$0xf]
    %v1254 = vld [vmem:[#allocation9 + $0x78] sm:$0xf]
    %v1255 = vld [vmem:[#allocation9 + $0x7c] sm:$0xf]
    %v1256 = vld [vmem:[%s7] sm:$0x1]
    %v1258 = vperm.slane %v1256, 0
    %v1292 = vunpack.c.l.b16 %v1224
    %v1293 = vunpack.c.l.b16 %v1225
    %v1294 = vunpack.c.l.b16 %v1226
    %v1295 = vunpack.c.l.b16 %v1227
    %v1296 = vunpack.c.l.b16 %v1228
    %v1297 = vunpack.c.l.b16 %v1229
    %v1298 = vunpack.c.l.b16 %v1230
    %v1299 = vunpack.c.l.b16 %v1231
    %v1300 = vunpack.c.l.b16 %v1232
    %v1301 = vunpack.c.l.b16 %v1233
    %v1302 = vunpack.c.l.b16 %v1234
    %v1303 = vunpack.c.l.b16 %v1235
    %v1304 = vunpack.c.l.b16 %v1236
    %v1305 = vunpack.c.l.b16 %v1237
    %v1306 = vunpack.c.l.b16 %v1238
    %v1307 = vunpack.c.l.b16 %v1239
    %v1308 = vunpack.c.l.b16 %v1240
    %v1309 = vunpack.c.l.b16 %v1241
    %v1310 = vunpack.c.l.b16 %v1242
    %v1311 = vunpack.c.l.b16 %v1243
    %v1312 = vunpack.c.l.b16 %v1244
    %v1313 = vunpack.c.l.b16 %v1245
    %v1314 = vunpack.c.l.b16 %v1246
    %v1315 = vunpack.c.l.b16 %v1247
    %v1316 = vunpack.c.l.b16 %v1248
    %v1317 = vunpack.c.l.b16 %v1249
    %v1318 = vunpack.c.l.b16 %v1250
    %v1319 = vunpack.c.l.b16 %v1251
    %v1320 = vunpack.c.l.b16 %v1252
    %v1321 = vunpack.c.l.b16 %v1253
    %v1322 = vunpack.c.l.b16 %v1254
    %v1323 = vunpack.c.l.b16 %v1255
    %v1324 = vpack.c.b16 %v1293, %v1292
    %v1325 = vpack.c.b16 %v1295, %v1294
    %v1326 = vpack.c.b16 %v1297, %v1296
    %v1327 = vpack.c.b16 %v1299, %v1298
    %v1328 = vpack.c.b16 %v1301, %v1300
    %v1329 = vpack.c.b16 %v1303, %v1302
    %v1330 = vpack.c.b16 %v1305, %v1304
    %v1331 = vpack.c.b16 %v1307, %v1306
    %v1332 = vpack.c.b16 %v1309, %v1308
    %v1333 = vpack.c.b16 %v1311, %v1310
    %v1334 = vpack.c.b16 %v1313, %v1312
    %v1335 = vpack.c.b16 %v1315, %v1314
    %v1336 = vpack.c.b16 %v1317, %v1316
    %v1337 = vpack.c.b16 %v1319, %v1318
    %v1338 = vpack.c.b16 %v1321, %v1320
    %v1339 = vpack.c.b16 %v1323, %v1322
    %1356 = vmatpush.bf16.msra.mxu0 %v1331
    %1357 = vmatpush.bf16.msra.mxu0 %v1330
    %1358 = vmatpush.bf16.msra.mxu0 %v1329
    %1359 = vmatpush.bf16.msra.mxu0 %v1328
    %1360 = vmatpush.bf16.msra.mxu0 %v1327
    %1361 = vmatpush.bf16.msra.mxu0 %v1326
    %1362 = vmatpush.bf16.msra.mxu0 %v1325
    %1363 = vmatpush.bf16.msra.mxu0 %v1324
    %1364 = vmatmul.bf16.gmra.mxu0 %v1222
    %v1365 = vpop.f32.mrf.mxu0
    %v1366 = vadd.f32 %v1258, %v1365
    %v1367 = vpop.f32.mrf.mxu0
    %1368 = vdwg.mxu0
    %1369 = vmatpush.bf16.msra.mxu0 %v1339
    %1370 = vmatpush.bf16.msra.mxu0 %v1338
    %1371 = vmatpush.bf16.msra.mxu0 %v1337
    %1372 = vmatpush.bf16.msra.mxu0 %v1336
    %1373 = vmatpush.bf16.msra.mxu0 %v1335
    %1374 = vmatpush.bf16.msra.mxu0 %v1334
    %1375 = vmatpush.bf16.msra.mxu0 %v1333
    %1376 = vmatpush.bf16.msra.mxu0 %v1332
    %1377 = vmatmul.bf16.gmra.mxu0 %v1223
    %v1378 = vpop.f32.mrf.mxu0
    %v1379 = vadd.f32 %v1366, %v1378
    %v1380 = vpop.f32.mrf.mxu0
    %1381 = vdwg.mxu0
    %1382 = vst [vmem:[#allocation11] sm:$0xff] %v1379
    // Predicated region
    $region50: #{tpu_custom_call.1} parent=1 // pred_check
      _
    $region51: #{tpu_custom_call.1} parent=1 // pred_check_branch
      %1384 = sbr.rel (0) target = $region53
    $region52: #{tpu_custom_call.1} parent=1 // pred_region
      %1386 = vsyncadd [#allocation5], 0
      %s1388 = sshll.u32 [#allocation11], 4
      %s1389 = int_to_ptr.vmem [resolvable:$true] %s1388
      %s1390 = sshll.u32 %s8, 4
      %s1391 = int_to_ptr.hbm [resolvable:$true] %s1390
      %1393 = dma.vmem_to_hbm [thread:$0]  %s1389, 128, %s1391, [#allocation5]
    $region53: #{tpu_custom_call.1} parent=1 // pred_fallthru
      _
    // Predicated region
    $region54: #{tpu_custom_call.1} parent=1 // pred_check
      _
    $region55: #{tpu_custom_call.1} parent=1 // pred_check_branch
      %1395 = sbr.rel (0) target = $region57
    $region56: #{tpu_custom_call.1} parent=1 // pred_region
      %1397 = dma.done [#allocation5], 128
    $region57: #{tpu_custom_call.1} parent=1 // pred_fallthru
      _
    %1398 = vsyncpa [#allocation4], 1
    %1399 = vsyncpa [#allocation7], 1
    %1400 = vsyncpa [#allocation10], 1
    %1401 = vsyncpa [#allocation5], 1

</llo_original>
